<compile_context>
chip_gen: v7x
topology: tpu7x:2x2x1
jax: 0.10.0
libtpu: 0.0.40
codegen_flags: <defaults>
</compile_context>

<pallas_src>
import jax
import jax.numpy as jnp
from jax import lax
from jax.experimental import pallas as pl
from jax.experimental.pallas import tpu as pltpu


def _model_kernel(x_ref, w1_ref, b1_ref, w2_ref, b2_ref, out_ref):
    # x_ref : (1, C=2, S=2) f32 VMEM
    # w1_ref: (2, 2) f32 SMEM,  b1_ref: (2,) f32 SMEM
    # w2_ref: (2, 2) f32 SMEM,  b2_ref: (2,) f32 SMEM
    # out_ref: (2, 2, 2) f32 VMEM

    # Static ref slices (free): rows x1[0, c, :]
    xr0 = x_ref[0, 0:1, :]                                            # (1, S)
    xr1 = x_ref[0, 1:2, :]                                            # (1, S)

    # v2.T rows: v2t_o[s] = v2[0, s, o] = sum_c x1[0, c, s] * w1[o, c] + b1[o]
    v2t0 = w1_ref[0, 0] * xr0 + w1_ref[0, 1] * xr1 + b1_ref[0]        # (1, S)
    v2t1 = w1_ref[1, 0] * xr0 + w1_ref[1, 1] * xr1 + b1_ref[1]        # (1, S)

    # x2.T rows: relu(linear2(v2)).T
    x2t0 = jnp.maximum(w2_ref[0, 0] * v2t0 + w2_ref[0, 1] * v2t1 + b2_ref[0], 0.0)
    x2t1 = jnp.maximum(w2_ref[1, 0] * v2t0 + w2_ref[1, 1] * v2t1 + b2_ref[1], 0.0)

    # torch.max(x2, dim=-1)[1] over a 2-wide dim: strict '>' keeps the
    # first-max tie-break.  One VPU compare, no XLU reduce, no iota.
    idx = (x2t1 > x2t0).astype(jnp.float32)                           # (1, S)
    v4t0 = x2t0 + idx                                                 # v4[0, :, 0]
    v4t1 = x2t1 + idx                                                 # v4[0, :, 1]
    # v5 = (v4 == -1) is identically zero (relu output + nonneg index) -> dropped.

    # Final linear2 + relu:  out[g, f, o] = relu(A[f, o] + B[g, o] + b2[o])
    #   A[f, o] = sum_s v4[0, s, f] * w2[o, s]
    #   B[g, o] = sum_s v2[0, s, g] * w2[o, s]
    # Build w2 columns / b2 as (1, 2) lane rows from SMEM scalars
    # (the in-kernel "2x2 transpose" of w2: one lane iota + three selects).
    lane = lax.broadcasted_iota(jnp.int32, (1, 2), 1)
    w2c0 = jnp.where(lane == 0, w2_ref[0, 0], w2_ref[1, 0])           # [w2[0,0], w2[1,0]]
    w2c1 = jnp.where(lane == 0, w2_ref[0, 1], w2_ref[1, 1])           # [w2[0,1], w2[1,1]]
    b2r = jnp.where(lane == 0, b2_ref[0], b2_ref[1])                  # [b2[0], b2[1]]

    a_f0 = v4t0[:, 0:1] * w2c0 + v4t0[:, 1:2] * w2c1                  # (1, O2) = A[0, :]
    a_f1 = v4t1[:, 0:1] * w2c0 + v4t1[:, 1:2] * w2c1                  # (1, O2) = A[1, :]
    b_g0 = v2t0[:, 0:1] * w2c0 + v2t0[:, 1:2] * w2c1                  # (1, O2) = B[0, :]
    b_g1 = v2t1[:, 0:1] * w2c0 + v2t1[:, 1:2] * w2c1                  # (1, O2) = B[1, :]

    # Four direct row stores -- no concatenate, no wrapper reshape.
    out_ref[0, 0:1, :] = jnp.maximum(a_f0 + b_g0 + b2r, 0.0)
    out_ref[0, 1:2, :] = jnp.maximum(a_f1 + b_g0 + b2r, 0.0)
    out_ref[1, 0:1, :] = jnp.maximum(a_f0 + b_g1 + b2r, 0.0)
    out_ref[1, 1:2, :] = jnp.maximum(a_f1 + b_g1 + b2r, 0.0)


def model_forward(x1, w1, b1, w2, b2):
    assert x1.shape == (1, 2, 2), "module is defined for x1 of shape (1, 2, 2)"
    assert w1.shape == (2, 2) and w2.shape == (2, 2)
    assert b1.shape == (2,) and b2.shape == (2,)

    vmem = pl.BlockSpec(memory_space=pltpu.MemorySpace.VMEM)
    smem = pl.BlockSpec(memory_space=pltpu.MemorySpace.SMEM)
    return pl.pallas_call(
        _model_kernel,
        out_shape=jax.ShapeDtypeStruct((2, 2, 2), jnp.float32),
        in_specs=[vmem, smem, smem, smem, smem],
        out_specs=vmem,
    )(x1, w1, b1, w2, b2)


if __name__ == "__main__":
    key = jax.random.PRNGKey(0)
    kx, k1, k2, k3, k4 = jax.random.split(key, 5)

    # deterministic inputs / parameters (torch.nn.Linear-style uniform bounds)
    bound = 1.0 / float(jnp.sqrt(2.0))
    x1 = jax.random.normal(kx, (1, 2, 2), dtype=jnp.float32)
    w1 = jax.random.uniform(k1, (2, 2), jnp.float32, -bound, bound)
    b1 = jax.random.uniform(k2, (2,), jnp.float32, -bound, bound)
    w2 = jax.random.uniform(k3, (2, 2), jnp.float32, -bound, bound)
    b2 = jax.random.uniform(k4, (2,), jnp.float32, -bound, bound)

    out = jax.block_until_ready(model_forward(x1, w1, b1, w2, b2))

    # pure-JAX reference, following the torch forward literally
    v1 = jnp.transpose(x1, (0, 2, 1))
    v2 = v1 @ w1.T + b1
    v3 = v2 @ w2.T + b2
    x2 = jax.nn.relu(v3)
    idx = jnp.argmax(x2, axis=-1)[..., None].astype(x2.dtype)   # torch.max(dim)[1], first max
    v4 = x2 + idx
    v5 = (v4 == -1).astype(x2.dtype)
    x3 = jnp.transpose(jnp.transpose(v4, (2, 1, 0)) + v5 + v2, (2, 1, 0))  # torch .T on 3-D
    x3 = jnp.transpose(x3, (0, 2, 1))
    ref = jax.nn.relu(x3 @ w2.T + b2)

    assert out.shape == ref.shape == (2, 2, 2), (out.shape, ref.shape)
    assert jnp.allclose(out, ref, atol=1e-5, rtol=1e-5), (out, ref)
    print("KERNEL_OK")
</pallas_src>

<mosaic_0001>
module attributes {stable_mosaic.version = 11 : i64} {
  func.func @_model_kernel(%arg0: memref<1x2x2xf32, #tpu.memory_space<vmem>>, %arg1: memref<2x2xf32, #tpu.memory_space<smem>>, %arg2: memref<2xf32, #tpu.memory_space<smem>>, %arg3: memref<2x2xf32, #tpu.memory_space<smem>>, %arg4: memref<2xf32, #tpu.memory_space<smem>>, %arg5: memref<2x2x2xf32, #tpu.memory_space<vmem>>) attributes {dimension_semantics = [], scalar_prefetch = 0 : i64, scratch_operands = 0 : i64, tpu.core_type = #tpu.core_type<tc>} {
    %c0 = arith.constant 0 : index
    %c0_0 = arith.constant 0 : index
    %c0_1 = arith.constant 0 : index
    %0 = vector.load %arg0[%c0, %c0_0, %c0_1] : memref<1x2x2xf32, #tpu.memory_space<vmem>>, vector<1x1x2xf32>
    %1 = vector.shape_cast %0 : vector<1x1x2xf32> to vector<1x2xf32>
    %c0_2 = arith.constant 0 : index
    %c1 = arith.constant 1 : index
    %c0_3 = arith.constant 0 : index
    %2 = vector.load %arg0[%c0_2, %c1, %c0_3] : memref<1x2x2xf32, #tpu.memory_space<vmem>>, vector<1x1x2xf32>
    %3 = vector.shape_cast %2 : vector<1x1x2xf32> to vector<1x2xf32>
    %c0_4 = arith.constant 0 : index
    %c0_5 = arith.constant 0 : index
    %4 = memref.load %arg1[%c0_4, %c0_5] : memref<2x2xf32, #tpu.memory_space<smem>>
    %5 = vector.broadcast %4 : f32 to vector<1x2xf32>
    %6 = arith.mulf %5, %1 : vector<1x2xf32>
    %c0_6 = arith.constant 0 : index
    %c1_7 = arith.constant 1 : index
    %7 = memref.load %arg1[%c0_6, %c1_7] : memref<2x2xf32, #tpu.memory_space<smem>>
    %8 = vector.broadcast %7 : f32 to vector<1x2xf32>
    %9 = arith.mulf %8, %3 : vector<1x2xf32>
    %10 = arith.addf %6, %9 : vector<1x2xf32>
    %c0_8 = arith.constant 0 : index
    %11 = memref.load %arg2[%c0_8] : memref<2xf32, #tpu.memory_space<smem>>
    %12 = vector.broadcast %11 : f32 to vector<1x2xf32>
    %13 = arith.addf %10, %12 : vector<1x2xf32>
    %c1_9 = arith.constant 1 : index
    %c0_10 = arith.constant 0 : index
    %14 = memref.load %arg1[%c1_9, %c0_10] : memref<2x2xf32, #tpu.memory_space<smem>>
    %15 = vector.broadcast %14 : f32 to vector<1x2xf32>
    %16 = arith.mulf %15, %1 : vector<1x2xf32>
    %c1_11 = arith.constant 1 : index
    %c1_12 = arith.constant 1 : index
    %17 = memref.load %arg1[%c1_11, %c1_12] : memref<2x2xf32, #tpu.memory_space<smem>>
    %18 = vector.broadcast %17 : f32 to vector<1x2xf32>
    %19 = arith.mulf %18, %3 : vector<1x2xf32>
    %20 = arith.addf %16, %19 : vector<1x2xf32>
    %c1_13 = arith.constant 1 : index
    %21 = memref.load %arg2[%c1_13] : memref<2xf32, #tpu.memory_space<smem>>
    %22 = vector.broadcast %21 : f32 to vector<1x2xf32>
    %23 = arith.addf %20, %22 : vector<1x2xf32>
    %c0_14 = arith.constant 0 : index
    %c0_15 = arith.constant 0 : index
    %24 = memref.load %arg3[%c0_14, %c0_15] : memref<2x2xf32, #tpu.memory_space<smem>>
    %25 = vector.broadcast %24 : f32 to vector<1x2xf32>
    %26 = arith.mulf %25, %13 : vector<1x2xf32>
    %c0_16 = arith.constant 0 : index
    %c1_17 = arith.constant 1 : index
    %27 = memref.load %arg3[%c0_16, %c1_17] : memref<2x2xf32, #tpu.memory_space<smem>>
    %28 = vector.broadcast %27 : f32 to vector<1x2xf32>
    %29 = arith.mulf %28, %23 : vector<1x2xf32>
    %30 = arith.addf %26, %29 : vector<1x2xf32>
    %c0_18 = arith.constant 0 : index
    %31 = memref.load %arg4[%c0_18] : memref<2xf32, #tpu.memory_space<smem>>
    %32 = vector.broadcast %31 : f32 to vector<1x2xf32>
    %33 = arith.addf %30, %32 : vector<1x2xf32>
    %cst = arith.constant 0.000000e+00 : f32
    %34 = vector.broadcast %cst : f32 to vector<1x2xf32>
    %35 = arith.maximumf %33, %34 : vector<1x2xf32>
    %c1_19 = arith.constant 1 : index
    %c0_20 = arith.constant 0 : index
    %36 = memref.load %arg3[%c1_19, %c0_20] : memref<2x2xf32, #tpu.memory_space<smem>>
    %37 = vector.broadcast %36 : f32 to vector<1x2xf32>
    %38 = arith.mulf %37, %13 : vector<1x2xf32>
    %c1_21 = arith.constant 1 : index
    %c1_22 = arith.constant 1 : index
    %39 = memref.load %arg3[%c1_21, %c1_22] : memref<2x2xf32, #tpu.memory_space<smem>>
    %40 = vector.broadcast %39 : f32 to vector<1x2xf32>
    %41 = arith.mulf %40, %23 : vector<1x2xf32>
    %42 = arith.addf %38, %41 : vector<1x2xf32>
    %c1_23 = arith.constant 1 : index
    %43 = memref.load %arg4[%c1_23] : memref<2xf32, #tpu.memory_space<smem>>
    %44 = vector.broadcast %43 : f32 to vector<1x2xf32>
    %45 = arith.addf %42, %44 : vector<1x2xf32>
    %cst_24 = arith.constant 0.000000e+00 : f32
    %46 = vector.broadcast %cst_24 : f32 to vector<1x2xf32>
    %47 = arith.maximumf %45, %46 : vector<1x2xf32>
    %48 = arith.cmpf ogt, %47, %35 : vector<1x2xf32>
    %49 = arith.extui %48 : vector<1x2xi1> to vector<1x2xi32>
    %50 = arith.sitofp %49 : vector<1x2xi32> to vector<1x2xf32>
    %51 = arith.addf %35, %50 : vector<1x2xf32>
    %52 = arith.addf %47, %50 : vector<1x2xf32>
    %53 = tpu.iota {dimensions = array<i32: 1>} : vector<1x2xi32>
    %c0_i32 = arith.constant 0 : i32
    %54 = vector.broadcast %c0_i32 : i32 to vector<1x2xi32>
    %55 = arith.cmpi eq, %53, %54 : vector<1x2xi32>
    %c0_25 = arith.constant 0 : index
    %c0_26 = arith.constant 0 : index
    %56 = memref.load %arg3[%c0_25, %c0_26] : memref<2x2xf32, #tpu.memory_space<smem>>
    %c1_27 = arith.constant 1 : index
    %c0_28 = arith.constant 0 : index
    %57 = memref.load %arg3[%c1_27, %c0_28] : memref<2x2xf32, #tpu.memory_space<smem>>
    %58 = vector.broadcast %56 : f32 to vector<1x2xf32>
    %59 = vector.broadcast %57 : f32 to vector<1x2xf32>
    %60 = arith.select %55, %58, %59 : vector<1x2xi1>, vector<1x2xf32>
    %c0_i32_29 = arith.constant 0 : i32
    %61 = vector.broadcast %c0_i32_29 : i32 to vector<1x2xi32>
    %62 = arith.cmpi eq, %53, %61 : vector<1x2xi32>
    %c0_30 = arith.constant 0 : index
    %c1_31 = arith.constant 1 : index
    %63 = memref.load %arg3[%c0_30, %c1_31] : memref<2x2xf32, #tpu.memory_space<smem>>
    %c1_32 = arith.constant 1 : index
    %c1_33 = arith.constant 1 : index
    %64 = memref.load %arg3[%c1_32, %c1_33] : memref<2x2xf32, #tpu.memory_space<smem>>
    %65 = vector.broadcast %63 : f32 to vector<1x2xf32>
    %66 = vector.broadcast %64 : f32 to vector<1x2xf32>
    %67 = arith.select %62, %65, %66 : vector<1x2xi1>, vector<1x2xf32>
    %c0_i32_34 = arith.constant 0 : i32
    %68 = vector.broadcast %c0_i32_34 : i32 to vector<1x2xi32>
    %69 = arith.cmpi eq, %53, %68 : vector<1x2xi32>
    %c0_35 = arith.constant 0 : index
    %70 = memref.load %arg4[%c0_35] : memref<2xf32, #tpu.memory_space<smem>>
    %c1_36 = arith.constant 1 : index
    %71 = memref.load %arg4[%c1_36] : memref<2xf32, #tpu.memory_space<smem>>
    %72 = vector.broadcast %70 : f32 to vector<1x2xf32>
    %73 = vector.broadcast %71 : f32 to vector<1x2xf32>
    %74 = arith.select %69, %72, %73 : vector<1x2xi1>, vector<1x2xf32>
    %75 = vector.extract_strided_slice %51 {offsets = [0, 0], sizes = [1, 1], strides = [1, 1]} : vector<1x2xf32> to vector<1x1xf32>
    %76 = vector.broadcast %75 : vector<1x1xf32> to vector<1x2xf32>
    %77 = arith.mulf %76, %60 : vector<1x2xf32>
    %78 = vector.extract_strided_slice %51 {offsets = [0, 1], sizes = [1, 1], strides = [1, 1]} : vector<1x2xf32> to vector<1x1xf32>
    %79 = vector.broadcast %78 : vector<1x1xf32> to vector<1x2xf32>
    %80 = arith.mulf %79, %67 : vector<1x2xf32>
    %81 = arith.addf %77, %80 : vector<1x2xf32>
    %82 = vector.extract_strided_slice %52 {offsets = [0, 0], sizes = [1, 1], strides = [1, 1]} : vector<1x2xf32> to vector<1x1xf32>
    %83 = vector.broadcast %82 : vector<1x1xf32> to vector<1x2xf32>
    %84 = arith.mulf %83, %60 : vector<1x2xf32>
    %85 = vector.extract_strided_slice %52 {offsets = [0, 1], sizes = [1, 1], strides = [1, 1]} : vector<1x2xf32> to vector<1x1xf32>
    %86 = vector.broadcast %85 : vector<1x1xf32> to vector<1x2xf32>
    %87 = arith.mulf %86, %67 : vector<1x2xf32>
    %88 = arith.addf %84, %87 : vector<1x2xf32>
    %89 = vector.extract_strided_slice %13 {offsets = [0, 0], sizes = [1, 1], strides = [1, 1]} : vector<1x2xf32> to vector<1x1xf32>
    %90 = vector.broadcast %89 : vector<1x1xf32> to vector<1x2xf32>
    %91 = arith.mulf %90, %60 : vector<1x2xf32>
    %92 = vector.extract_strided_slice %13 {offsets = [0, 1], sizes = [1, 1], strides = [1, 1]} : vector<1x2xf32> to vector<1x1xf32>
    %93 = vector.broadcast %92 : vector<1x1xf32> to vector<1x2xf32>
    %94 = arith.mulf %93, %67 : vector<1x2xf32>
    %95 = arith.addf %91, %94 : vector<1x2xf32>
    %96 = vector.extract_strided_slice %23 {offsets = [0, 0], sizes = [1, 1], strides = [1, 1]} : vector<1x2xf32> to vector<1x1xf32>
    %97 = vector.broadcast %96 : vector<1x1xf32> to vector<1x2xf32>
    %98 = arith.mulf %97, %60 : vector<1x2xf32>
    %99 = vector.extract_strided_slice %23 {offsets = [0, 1], sizes = [1, 1], strides = [1, 1]} : vector<1x2xf32> to vector<1x1xf32>
    %100 = vector.broadcast %99 : vector<1x1xf32> to vector<1x2xf32>
    %101 = arith.mulf %100, %67 : vector<1x2xf32>
    %102 = arith.addf %98, %101 : vector<1x2xf32>
    %103 = arith.addf %81, %95 : vector<1x2xf32>
    %104 = arith.addf %103, %74 : vector<1x2xf32>
    %cst_37 = arith.constant 0.000000e+00 : f32
    %105 = vector.broadcast %cst_37 : f32 to vector<1x2xf32>
    %106 = arith.maximumf %104, %105 : vector<1x2xf32>
    %c0_38 = arith.constant 0 : index
    %c0_39 = arith.constant 0 : index
    %c0_40 = arith.constant 0 : index
    %107 = vector.load %arg5[%c0_38, %c0_39, %c0_40] : memref<2x2x2xf32, #tpu.memory_space<vmem>>, vector<1x1x2xf32>
    %108 = vector.shape_cast %107 : vector<1x1x2xf32> to vector<1x2xf32>
    %109 = vector.shape_cast %106 : vector<1x2xf32> to vector<1x1x2xf32>
    tpu.vector_store %arg5[%c0_38, %c0_39, %c0_40], %109 {strides = array<i32>} : memref<2x2x2xf32, #tpu.memory_space<vmem>>, vector<1x1x2xf32>,
    %110 = arith.addf %88, %95 : vector<1x2xf32>
    %111 = arith.addf %110, %74 : vector<1x2xf32>
    %cst_41 = arith.constant 0.000000e+00 : f32
    %112 = vector.broadcast %cst_41 : f32 to vector<1x2xf32>
    %113 = arith.maximumf %111, %112 : vector<1x2xf32>
    %c0_42 = arith.constant 0 : index
    %c1_43 = arith.constant 1 : index
    %c0_44 = arith.constant 0 : index
    %114 = vector.load %arg5[%c0_42, %c1_43, %c0_44] : memref<2x2x2xf32, #tpu.memory_space<vmem>>, vector<1x1x2xf32>
    %115 = vector.shape_cast %114 : vector<1x1x2xf32> to vector<1x2xf32>
    %116 = vector.shape_cast %113 : vector<1x2xf32> to vector<1x1x2xf32>
    tpu.vector_store %arg5[%c0_42, %c1_43, %c0_44], %116 {strides = array<i32>} : memref<2x2x2xf32, #tpu.memory_space<vmem>>, vector<1x1x2xf32>,
    %117 = arith.addf %81, %102 : vector<1x2xf32>
    %118 = arith.addf %117, %74 : vector<1x2xf32>
    %cst_45 = arith.constant 0.000000e+00 : f32
    %119 = vector.broadcast %cst_45 : f32 to vector<1x2xf32>
    %120 = arith.maximumf %118, %119 : vector<1x2xf32>
    %c1_46 = arith.constant 1 : index
    %c0_47 = arith.constant 0 : index
    %c0_48 = arith.constant 0 : index
    %121 = vector.load %arg5[%c1_46, %c0_47, %c0_48] : memref<2x2x2xf32, #tpu.memory_space<vmem>>, vector<1x1x2xf32>
    %122 = vector.shape_cast %121 : vector<1x1x2xf32> to vector<1x2xf32>
    %123 = vector.shape_cast %120 : vector<1x2xf32> to vector<1x1x2xf32>
    tpu.vector_store %arg5[%c1_46, %c0_47, %c0_48], %123 {strides = array<i32>} : memref<2x2x2xf32, #tpu.memory_space<vmem>>, vector<1x1x2xf32>,
    %124 = arith.addf %88, %102 : vector<1x2xf32>
    %125 = arith.addf %124, %74 : vector<1x2xf32>
    %cst_49 = arith.constant 0.000000e+00 : f32
    %126 = vector.broadcast %cst_49 : f32 to vector<1x2xf32>
    %127 = arith.maximumf %125, %126 : vector<1x2xf32>
    %c1_50 = arith.constant 1 : index
    %c1_51 = arith.constant 1 : index
    %c0_52 = arith.constant 0 : index
    %128 = vector.load %arg5[%c1_50, %c1_51, %c0_52] : memref<2x2x2xf32, #tpu.memory_space<vmem>>, vector<1x1x2xf32>
    %129 = vector.shape_cast %128 : vector<1x1x2xf32> to vector<1x2xf32>
    %130 = vector.shape_cast %127 : vector<1x2xf32> to vector<1x1x2xf32>
    tpu.vector_store %arg5[%c1_50, %c1_51, %c0_52], %130 {strides = array<i32>} : memref<2x2x2xf32, #tpu.memory_space<vmem>>, vector<1x1x2xf32>,
    return
  }
}

</mosaic_0001>

<llo_original>
// kernel: tpu_custom_call.1
$region0: #{tpu_custom_call.1}
  #allocation0 [shape = 'u32[]', space=smem, size = 0x4, offset = 0x4, fixed_abs, tag = 'smem constant byte address 0x4 - core index']
  #allocation1 [shape = 'u32[144,128]{1,0:T(1,128)}', space=vmem, size = 0x12000, scoped, tag = 'internal scratch']
  %s0 = inlined_call_operand.hbm [shape: f32[1,2,2], index: 0, kind: input, shape index: {}]
  %s1 = inlined_call_operand.vmem [shape: f32[2,2], index: 1, kind: input, shape index: {}]
  %s2 = inlined_call_operand.vmem [shape: f32[2], index: 2, kind: input, shape index: {}]
  %s3 = inlined_call_operand.vmem [shape: f32[2,2], index: 3, kind: input, shape index: {}]
  %s4 = inlined_call_operand.vmem [shape: f32[2], index: 4, kind: input, shape index: {}]
  %s5 = inlined_call_operand.hbm [shape: f32[2,2,2], index: 5, kind: output, shape index: {}]
  %s6 = sld [smem:[#allocation0]]
  $region50: #{tpu_custom_call.1} parent=0
    _
  %s8 = ssub.s32 1, %s6
  %s9 = scalar_select 0, %s8, %s6
  $region1: #{tpu_custom_call.1} parent=0
    #allocation2 [shape = 'u8[1024]{0}', space=vmem, size = 0x400, scoped, tag = 'input window, operand 0, single buffered']
    #allocation3 [shape = 's32[1]{0}', space=sflag, size = 0x4, scoped, tag = 'scoped memory for tpu_custom_call.1']
    #allocation4 [shape = 's32[1]{0}', space=sflag, size = 0x4, scoped, tag = 'scoped memory for tpu_custom_call.1']
    #allocation5 [shape = 's32[1]{0}', space=sflag, size = 0x4, scoped, tag = 'scoped memory for tpu_custom_call.1']
    #allocation6 [shape = 'u8[1024]{0}', space=smem, size = 0x400, scoped, tag = 'input window, operand 1, single buffered']
    #allocation7 [shape = 'u8[512]{0}', space=smem, size = 0x200, scoped, tag = 'input window, operand 2, single buffered']
    #allocation8 [shape = 's32[1]{0}', space=sflag, size = 0x4, scoped, tag = 'scoped memory for tpu_custom_call.1']
    #allocation9 [shape = 'u8[1024]{0}', space=smem, size = 0x400, scoped, tag = 'input window, operand 3, single buffered']
    #allocation10 [shape = 'u8[512]{0}', space=smem, size = 0x200, scoped, tag = 'input window, operand 4, single buffered']
    #allocation11 [shape = 's32[1]{0}', space=sflag, size = 0x4, scoped, tag = 'scoped memory for tpu_custom_call.1']
    #allocation12 [shape = 'u8[2048]{0}', space=vmem, size = 0x800, scoped, tag = 'output window, operand 0, single buffered']
    %10 = vsyncpa [#allocation3], 0
    %11 = vsyncpa [#allocation5], 0
    %12 = vsyncpa [#allocation8], 0
    %13 = vsyncpa [#allocation11], 0
    %14 = vsyncpa [#allocation4], 0
    // Predicated region
    $region2: #{tpu_custom_call.1} parent=1 // pred_check
      _
    $region3: #{tpu_custom_call.1} parent=1 // pred_check_branch
      %16 = sbr.rel (0) target = $region5
    $region4: #{tpu_custom_call.1} parent=1 // pred_region
      %s18 = ssub.s32 32, 32
      %19 = vsyncadd [#allocation3], %s18
      %s21 = sshll.u32 [#allocation2], 4
      %s22 = int_to_ptr.vmem [resolvable:$true] %s21
      %24 = dma.hbm_to_vmem [thread:$0]  %s0, 32, %s22, [#allocation3]
    $region5: #{tpu_custom_call.1} parent=1 // pred_fallthru
      _
    // Predicated region
    $region6: #{tpu_custom_call.1} parent=1 // pred_check
      _
    $region7: #{tpu_custom_call.1} parent=1 // pred_check_branch
      %26 = sbr.rel (0) target = $region9
    $region8: #{tpu_custom_call.1} parent=1 // pred_region
      %s28 = ssub.s32 32, 32
      %29 = vsyncadd [#allocation5], %s28
      %s31 = sshll.u32 %s1, 4
      %s32 = int_to_ptr.vmem [resolvable:$true] %s31
      %34 = dma.vmem_to_smem %s32, 32, [#allocation6], [#allocation5]
    $region9: #{tpu_custom_call.1} parent=1 // pred_fallthru
      _
    // Predicated region
    $region10: #{tpu_custom_call.1} parent=1 // pred_check
      _
    $region11: #{tpu_custom_call.1} parent=1 // pred_check_branch
      %36 = sbr.rel (0) target = $region13
    $region12: #{tpu_custom_call.1} parent=1 // pred_region
      %s38 = ssub.s32 16, 16
      %39 = vsyncadd [#allocation8], %s38
      %s41 = sshll.u32 %s2, 4
      %s42 = int_to_ptr.vmem [resolvable:$true] %s41
      %44 = dma.vmem_to_smem %s42, 16, [#allocation7], [#allocation8]
    $region13: #{tpu_custom_call.1} parent=1 // pred_fallthru
      _
    // Predicated region
    $region14: #{tpu_custom_call.1} parent=1 // pred_check
      _
    $region15: #{tpu_custom_call.1} parent=1 // pred_check_branch
      %46 = sbr.rel (0) target = $region17
    $region16: #{tpu_custom_call.1} parent=1 // pred_region
      %s48 = ssub.s32 32, 32
      %49 = vsyncadd [#allocation8], %s48
      %s51 = sshll.u32 %s3, 4
      %s52 = int_to_ptr.vmem [resolvable:$true] %s51
      %54 = dma.vmem_to_smem %s52, 32, [#allocation9], [#allocation8]
    $region17: #{tpu_custom_call.1} parent=1 // pred_fallthru
      _
    // Predicated region
    $region18: #{tpu_custom_call.1} parent=1 // pred_check
      _
    $region19: #{tpu_custom_call.1} parent=1 // pred_check_branch
      %56 = sbr.rel (0) target = $region21
    $region20: #{tpu_custom_call.1} parent=1 // pred_region
      %s58 = ssub.s32 16, 16
      %59 = vsyncadd [#allocation11], %s58
      %s61 = sshll.u32 %s4, 4
      %s62 = int_to_ptr.vmem [resolvable:$true] %s61
      %64 = dma.vmem_to_smem %s62, 16, [#allocation10], [#allocation11]
    $region21: #{tpu_custom_call.1} parent=1 // pred_fallthru
      _
    // Predicated region
    $region22: #{tpu_custom_call.1} parent=1 // pred_check
      _
    $region23: #{tpu_custom_call.1} parent=1 // pred_check_branch
      %66 = sbr.rel (0) target = $region25
    $region24: #{tpu_custom_call.1} parent=1 // pred_region
      %67 = dma.done [#allocation3], 32
    $region25: #{tpu_custom_call.1} parent=1 // pred_fallthru
      _
    // Predicated region
    $region26: #{tpu_custom_call.1} parent=1 // pred_check
      _
    $region27: #{tpu_custom_call.1} parent=1 // pred_check_branch
      %69 = sbr.rel (0) target = $region29
    $region28: #{tpu_custom_call.1} parent=1 // pred_region
      %70 = dma.done [#allocation5], 32
    $region29: #{tpu_custom_call.1} parent=1 // pred_fallthru
      _
    // Predicated region
    $region30: #{tpu_custom_call.1} parent=1 // pred_check
      _
    $region31: #{tpu_custom_call.1} parent=1 // pred_check_branch
      %72 = sbr.rel (0) target = $region33
    $region32: #{tpu_custom_call.1} parent=1 // pred_region
      %73 = dma.done [#allocation8], 16
    $region33: #{tpu_custom_call.1} parent=1 // pred_fallthru
      _
    // Predicated region
    $region34: #{tpu_custom_call.1} parent=1 // pred_check
      _
    $region35: #{tpu_custom_call.1} parent=1 // pred_check_branch
      %75 = sbr.rel (0) target = $region37
    $region36: #{tpu_custom_call.1} parent=1 // pred_region
      %76 = dma.done [#allocation8], 32
    $region37: #{tpu_custom_call.1} parent=1 // pred_fallthru
      _
    // Predicated region
    $region38: #{tpu_custom_call.1} parent=1 // pred_check
      _
    $region39: #{tpu_custom_call.1} parent=1 // pred_check_branch
      %78 = sbr.rel (0) target = $region41
    $region40: #{tpu_custom_call.1} parent=1 // pred_region
      %79 = dma.done [#allocation11], 16
    $region41: #{tpu_custom_call.1} parent=1 // pred_fallthru
      _
    %80 = sfence
    %v81 = vld [vmem:[#allocation2] sm:$0x1]
    %v82 = vld [vmem:[#allocation2 + $0x1] sm:$0x1]
    %s83 = sld [smem:[#allocation6]]
    %v84 = vstv %s83
    %v85 = vmul.f32 %v84, %v81
    %s86 = sld [smem:[#allocation6 + $0x1]]
    %v87 = vstv %s86
    %v88 = vmul.f32 %v87, %v82
    %v89 = vadd.f32 %v85, %v88
    %s90 = sld [smem:[#allocation7]]
    %v91 = vstv %s90
    %v92 = vadd.f32 %v89, %v91
    %s93 = sld [smem:[#allocation6 + $0x80]]
    %v94 = vstv %s93
    %v95 = vmul.f32 %v94, %v81
    %s96 = sld [smem:[#allocation6 + $0x81]]
    %v97 = vstv %s96
    %v98 = vmul.f32 %v97, %v82
    %v99 = vadd.f32 %v95, %v98
    %s100 = sld [smem:[#allocation7 + $0x1]]
    %v101 = vstv %s100
    %v102 = vadd.f32 %v99, %v101
    %s103 = sld [smem:[#allocation9]]
    %v104 = vstv %s103
    %v105 = vmul.f32 %v104, %v92
    %s106 = sld [smem:[#allocation9 + $0x1]]
    %v107 = vstv %s106
    %v108 = vmul.f32 %v107, %v102
    %v109 = vadd.f32 %v105, %v108
    %s110 = sld [smem:[#allocation10]]
    %v111 = vstv %s110
    %v112 = vadd.f32 %v109, %v111
    %v113 = vmax.f32 %v112, 0.0
    %s114 = sld [smem:[#allocation9 + $0x80]]
    %v115 = vstv %s114
    %v116 = vmul.f32 %v115, %v92
    %s117 = sld [smem:[#allocation9 + $0x81]]
    %v118 = vstv %s117
    %v119 = vmul.f32 %v118, %v102
    %v120 = vadd.f32 %v116, %v119
    %s121 = sld [smem:[#allocation10 + $0x1]]
    %v122 = vstv %s121
    %v123 = vadd.f32 %v120, %v122
    %v124 = vmax.f32 %v123, 0.0
    %vm125 = vcmp.gt.f32.partialorder %v124, %v113
    %v126 = vsel %vm125, 1, 0
    %v127 = vcvt.s32.f32 %v126
    %v128 = vadd.f32 %v113, %v127
    %v129 = vadd.f32 %v124, %v127
    %v130 = vlaneseq
    %v131 = vand.u32 %v130, 127
    %vm132 = vcmp.eq.s32.totalorder %v131, 0
    %v133 = vsel %vm132, %v104, %v115
    %v134 = vsel %vm132, %v107, %v118
    %v135 = vsel %vm132, %v111, %v122
    %137 = vset.pattern.permute.xlu0 0
    %138 = vperm.xlu0 %137, %v128
    %v139 = vpop.permute.xlu0 %138
    %v141 = vmul.f32 %v139, %v133
    %142 = vset.pattern.permute.xlu0 1
    %143 = vperm.xlu0 %142, %v128
    %v144 = vpop.permute.xlu0 %143
    %v146 = vmul.f32 %v144, %v134
    %v147 = vadd.f32 %v141, %v146
    %149 = vset.pattern.permute.xlu0 0
    %150 = vperm.xlu0 %149, %v129
    %v151 = vpop.permute.xlu0 %150
    %v153 = vmul.f32 %v151, %v133
    %154 = vset.pattern.permute.xlu0 1
    %155 = vperm.xlu0 %154, %v129
    %v156 = vpop.permute.xlu0 %155
    %v158 = vmul.f32 %v156, %v134
    %v159 = vadd.f32 %v153, %v158
    %161 = vset.pattern.permute.xlu0 0
    %162 = vperm.xlu0 %161, %v92
    %v163 = vpop.permute.xlu0 %162
    %v165 = vmul.f32 %v163, %v133
    %166 = vset.pattern.permute.xlu0 1
    %167 = vperm.xlu0 %166, %v92
    %v168 = vpop.permute.xlu0 %167
    %v170 = vmul.f32 %v168, %v134
    %v171 = vadd.f32 %v165, %v170
    %173 = vset.pattern.permute.xlu0 0
    %174 = vperm.xlu0 %173, %v102
    %v175 = vpop.permute.xlu0 %174
    %v177 = vmul.f32 %v175, %v133
    %178 = vset.pattern.permute.xlu0 1
    %179 = vperm.xlu0 %178, %v102
    %v180 = vpop.permute.xlu0 %179
    %v182 = vmul.f32 %v180, %v134
    %v183 = vadd.f32 %v177, %v182
    %v184 = vadd.f32 %v147, %v171
    %v185 = vadd.f32 %v184, %v135
    %v186 = vmax.f32 %v185, 0.0
    %vm187 = vcmask 8192
    %188 = vst.msk [vmem:[#allocation12] sm:$0x1] %vm187, %v186
    %v189 = vadd.f32 %v159, %v171
    %v190 = vadd.f32 %v189, %v135
    %v191 = vmax.f32 %v190, 0.0
    %192 = vst.msk [vmem:[#allocation12 + $0x1] sm:$0x1] %vm187, %v191
    %v193 = vadd.f32 %v147, %v183
    %v194 = vadd.f32 %v193, %v135
    %v195 = vmax.f32 %v194, 0.0
    %s196 = scalar_lea.vmem [#allocation12], 2
    %197 = vst.msk [vmem:[%s196] sm:$0x1] %vm187, %v195
    %v198 = vadd.f32 %v159, %v183
    %v199 = vadd.f32 %v198, %v135
    %v200 = vmax.f32 %v199, 0.0
    %201 = vst.msk [vmem:[%s196 + $0x1] sm:$0x1] %vm187, %v200
    // Predicated region
    $region42: #{tpu_custom_call.1} parent=1 // pred_check
      _
    $region43: #{tpu_custom_call.1} parent=1 // pred_check_branch
      %203 = sbr.rel (0) target = $region45
    $region44: #{tpu_custom_call.1} parent=1 // pred_region
      %s205 = ssub.s32 64, 64
      %206 = vsyncadd [#allocation4], %s205
      %s207 = sshll.u32 [#allocation12], 4
      %s208 = int_to_ptr.vmem [resolvable:$true] %s207
      %213 = dma.vmem_to_hbm [thread:$0]  %s208, 64, %s5, [#allocation4], 32, 32, 2
    $region45: #{tpu_custom_call.1} parent=1 // pred_fallthru
      _
    // Predicated region
    $region46: #{tpu_custom_call.1} parent=1 // pred_check
      _
    $region47: #{tpu_custom_call.1} parent=1 // pred_check_branch
      %215 = sbr.rel (0) target = $region49
    $region48: #{tpu_custom_call.1} parent=1 // pred_region
      %216 = dma.done [#allocation4], 64
    $region49: #{tpu_custom_call.1} parent=1 // pred_fallthru
      _
    %217 = vsyncpa [#allocation3], 1
    %218 = vsyncpa [#allocation4], 1
    %219 = vsyncpa [#allocation5], 1
    %220 = vsyncpa [#allocation8], 1
    %221 = vsyncpa [#allocation11], 1

</llo_original>
